<compile_context>
chip_gen: v7x
topology: tpu7x:2x2x1
jax: 0.10.0
libtpu: 0.0.40
codegen_flags: <defaults>
</compile_context>

<pallas_src>
import jax
import jax.numpy as jnp
from jax.experimental import pallas as pl
from jax.experimental.pallas import tpu as pltpu


_LANE_CANDIDATES = (1024, 512, 256, 128)     # widest lane-dense slab that divides total
_TARGET_BLOCK_BYTES = 4 * 1024 * 1024        # ~4 MiB per block (16 MiB with 2x double-buffer)
_VMEM_LIMIT_BYTES = 32 * 1024 * 1024         # >= v5e default, <= v7x physical


def _scale_kernel(scale_ref, x_ref, o_ref):
    # scale_ref: SMEM (1,1) f32 scalar; x_ref / o_ref: VMEM tiles.
    s = scale_ref[0, 0]
    o_ref[...] = x_ref[...] * s.astype(x_ref.dtype)


def _sublane(dtype) -> int:
    # Packed sublane count: 8 for 32-bit, 16 for 16-bit, 32 for 8-bit dtypes.
    return {4: 8, 2: 16, 1: 32}.get(jnp.dtype(dtype).itemsize, 8)


def _scale_2d(x2d: jax.Array, scale_smem: jax.Array) -> jax.Array:
    rows, lane = x2d.shape
    dtype = x2d.dtype
    itemsize = jnp.dtype(dtype).itemsize
    sub = _sublane(dtype)

    # Row-tile sized so one block is ~4 MiB, aligned to the packed sublane count.
    tm = _TARGET_BLOCK_BYTES // (lane * itemsize)
    tm = max(sub, (tm // sub) * sub)
    if tm >= rows:
        tm = rows  # full-extent block: no (8,128) divisibility requirement

    grid = (pl.cdiv(rows, tm),)  # partial tail block is masked by Pallas

    return pl.pallas_call(
        _scale_kernel,
        out_shape=jax.ShapeDtypeStruct((rows, lane), dtype),
        grid_spec=pl.GridSpec(
            grid=grid,
            in_specs=[
                pl.BlockSpec(memory_space=pltpu.SMEM),        # scale scalar
                pl.BlockSpec((tm, lane), lambda i: (i, 0)),   # input tile
            ],
            out_specs=pl.BlockSpec((tm, lane), lambda i: (i, 0)),
        ),
        compiler_params=pltpu.CompilerParams(
            dimension_semantics=("parallel",),
            vmem_limit_bytes=_VMEM_LIMIT_BYTES,
        ),
    )(scale_smem, x2d)


def scale_forward(x: jax.Array, scale) -> jax.Array:
    """out = x * scale (learnable scalar parameter), output dtype == x.dtype."""
    orig_shape = x.shape
    total = x.size
    # TODO(synk): integer inputs would promote to float in PyTorch; this kernel
    # keeps the input dtype (feature maps are floating point in nnDetection).
    scale_smem = jnp.asarray(scale, dtype=jnp.float32).reshape(1, 1)

    if total == 0:
        return x

    lane = next((c for c in _LANE_CANDIDATES if total % c == 0), None)
    if lane is not None:
        # Common aligned case: free reshape, no extra HBM passes.
        out2d = _scale_2d(x.reshape(total // lane, lane), scale_smem)
        return out2d.reshape(orig_shape)

    # Ragged fallback (total not a multiple of 128): pad to a tileable slab.
    lane = 128
    pad = (-total) % (_sublane(x.dtype) * lane)
    x_flat = jnp.pad(x.reshape(-1), (0, pad))
    out2d = _scale_2d(x_flat.reshape(-1, lane), scale_smem)
    return out2d.reshape(-1)[:total].reshape(orig_shape)


if __name__ == "__main__":
    key = jax.random.PRNGKey(0)
    # NCHW input, small shapes: batch=2, channels=4, spatial=16x16
    x = jax.random.normal(key, (2, 4, 16, 16), dtype=jnp.float32)

    # Deterministic parameter init matching nn.Parameter(torch.tensor(1.0))
    scale = jnp.float32(1.0)

    out = scale_forward(x, scale)
    jax.block_until_ready(out)
    assert out.shape == x.shape and out.dtype == x.dtype
    assert jnp.allclose(out, x * scale, atol=0, rtol=0)

    # Non-trivial scale value.
    out2 = scale_forward(x, jnp.float32(2.5))
    jax.block_until_ready(out2)
    assert jnp.allclose(out2, x * 2.5, atol=1e-6, rtol=1e-6)

    # bf16 input (stays bf16, matching torch promotion for 0-dim param).
    xb = x.astype(jnp.bfloat16)
    out3 = scale_forward(xb, jnp.float32(2.5))
    jax.block_until_ready(out3)
    assert out3.dtype == jnp.bfloat16
    assert jnp.allclose(out3.astype(jnp.float32),
                        (xb * jnp.bfloat16(2.5)).astype(jnp.float32),
                        atol=0, rtol=0)

    # Ragged total (not a multiple of 128) exercises the fallback path.
    xr = jax.random.normal(jax.random.PRNGKey(1), (3, 5, 7), dtype=jnp.float32)
    out4 = scale_forward(xr, jnp.float32(0.5))
    jax.block_until_ready(out4)
    assert out4.shape == xr.shape
    assert jnp.allclose(out4, xr * 0.5, atol=0, rtol=0)

    print("KERNEL_OK")
</pallas_src>

<mosaic_0001>
module attributes {stable_mosaic.version = 11 : i64} {
  func.func @_scale_kernel(%arg0: i32, %arg1: memref<1x1xf32, #tpu.memory_space<smem>>, %arg2: memref<2x1024xf32, #tpu.memory_space<vmem>>, %arg3: memref<2x1024xf32, #tpu.memory_space<vmem>>) attributes {dimension_semantics = [#tpu.dimension_semantics<parallel>], iteration_bounds = array<i64: 1>, scalar_prefetch = 0 : i64, scratch_operands = 0 : i64, tpu.core_type = #tpu.core_type<tc>, window_params = [{transform_indices = @transform_0, window_bounds = array<i64: 1, 1>}, {transform_indices = @transform_1, window_bounds = array<i64: 2, 1024>}, {transform_indices = @transform_2, window_bounds = array<i64: 2, 1024>}]} {
    %c0 = arith.constant 0 : index
    %c0_0 = arith.constant 0 : index
    %0 = memref.load %arg1[%c0, %c0_0] : memref<1x1xf32, #tpu.memory_space<smem>>
    %c0_1 = arith.constant 0 : index
    %c0_2 = arith.constant 0 : index
    %1 = vector.load %arg2[%c0_1, %c0_2] : memref<2x1024xf32, #tpu.memory_space<vmem>>, vector<2x1024xf32>
    %2 = vector.broadcast %0 : f32 to vector<2x1024xf32>
    %3 = arith.mulf %1, %2 : vector<2x1024xf32>
    %c0_3 = arith.constant 0 : index
    %c0_4 = arith.constant 0 : index
    %4 = vector.load %arg3[%c0_3, %c0_4] : memref<2x1024xf32, #tpu.memory_space<vmem>>, vector<2x1024xf32>
    tpu.vector_store %arg3[%c0_3, %c0_4], %3 {strides = array<i32>} : memref<2x1024xf32, #tpu.memory_space<vmem>>, vector<2x1024xf32>,
    return
  }
  func.func @transform_0(%arg0: i32) -> (i32, i32) {
    %c0_i32 = arith.constant 0 : i32
    %c0_i32_0 = arith.constant 0 : i32
    %c0_i32_1 = arith.constant 0 : i32
    return %c0_i32, %c0_i32_0 : i32, i32
  }
  func.func @transform_1(%arg0: i32) -> (i32, i32) {
    %c0_i32 = arith.constant 0 : i32
    %c0_i32_0 = arith.constant 0 : i32
    return %arg0, %c0_i32 : i32, i32
  }
  func.func @transform_2(%arg0: i32) -> (i32, i32) {
    %c0_i32 = arith.constant 0 : i32
    %c0_i32_0 = arith.constant 0 : i32
    return %arg0, %c0_i32 : i32, i32
  }
}

</mosaic_0001>

<llo_original>
// kernel: tpu_custom_call.1
$region0: #{tpu_custom_call.1}
  #allocation0 [shape = 'u32[]', space=smem, size = 0x4, offset = 0x4, fixed_abs, tag = 'smem constant byte address 0x4 - core index']
  #allocation1 [shape = 'u32[144,128]{1,0:T(1,128)}', space=vmem, size = 0x12000, scoped, tag = 'internal scratch']
  #allocation2 [shape = 'f32[1,1]{1,0:T(1,128)S(6)}', space=smem, size = 0x200, scoped, tag = 'scoped memory for tpu_custom_call.1']
  %s0 = inlined_call_operand.<no memory space> [shape: f32[1,1], index: 0, kind: input, shape index: {}]
  %s1 = inlined_call_operand.hbm [shape: f32[2,1024], index: 1, kind: input, shape index: {}]
  %s2 = inlined_call_operand.hbm [shape: f32[2,1024], index: 2, kind: output, shape index: {}]
  %s3 = sld [smem:[#allocation0]]
  $region22: #{tpu_custom_call.1} parent=0
    _
  %s5 = ssub.s32 1, %s3
  %s6 = scalar_select 0, %s5, %s3
  %7 = sst [smem:[#allocation2]] %s0
  $region1: #{tpu_custom_call.1} parent=0
    #allocation3 [shape = 'u8[8192]{0}', space=vmem, size = 0x2000, scoped, tag = 'input window, operand 1, single buffered']
    #allocation4 [shape = 's32[1]{0}', space=sflag, size = 0x4, scoped, tag = 'scoped memory for tpu_custom_call.1']
    #allocation5 [shape = 's32[1]{0}', space=sflag, size = 0x4, scoped, tag = 'scoped memory for tpu_custom_call.1']
    #allocation6 [shape = 'u8[8192]{0}', space=vmem, size = 0x2000, scoped, tag = 'output window, operand 0, single buffered']
    %8 = vsyncpa [#allocation4], 0
    %9 = vsyncpa [#allocation5], 0
    // Predicated region
    $region2: #{tpu_custom_call.1} parent=1 // pred_check
      _
    $region3: #{tpu_custom_call.1} parent=1 // pred_check_branch
      %11 = sbr.rel (0) target = $region5
    $region4: #{tpu_custom_call.1} parent=1 // pred_region
      _
    $region5: #{tpu_custom_call.1} parent=1 // pred_fallthru
      _
    // Predicated region
    $region6: #{tpu_custom_call.1} parent=1 // pred_check
      _
    $region7: #{tpu_custom_call.1} parent=1 // pred_check_branch
      %13 = sbr.rel (0) target = $region9
    $region8: #{tpu_custom_call.1} parent=1 // pred_region
      %s15 = ssub.s32 256, 256
      %16 = vsyncadd [#allocation4], %s15
      %s18 = sshll.u32 [#allocation3], 4
      %s19 = int_to_ptr.vmem [resolvable:$true] %s18
      %21 = dma.hbm_to_vmem [thread:$0]  %s1, 256, %s19, [#allocation4]
    $region9: #{tpu_custom_call.1} parent=1 // pred_fallthru
      _
    // Predicated region
    $region10: #{tpu_custom_call.1} parent=1 // pred_check
      _
    $region11: #{tpu_custom_call.1} parent=1 // pred_check_branch
      %23 = sbr.rel (0) target = $region13
    $region12: #{tpu_custom_call.1} parent=1 // pred_region
      %24 = dma.done [#allocation4], 256
    $region13: #{tpu_custom_call.1} parent=1 // pred_fallthru
      _
    %s25 = sld [smem:[#allocation2]]
    %v26 = vld [vmem:[#allocation3] sm:$0xff]
    %v27 = vld [vmem:[#allocation3 + $0x8] sm:$0xff]
    %v28 = vstv %s25
    %v29 = vmul.f32 %v26, %v28
    %v30 = vmul.f32 %v27, %v28
    %31 = vst [vmem:[#allocation6] sm:$0xff] %v29
    %32 = vst [vmem:[#allocation6 + $0x8] sm:$0xff] %v30
    // Predicated region
    $region14: #{tpu_custom_call.1} parent=1 // pred_check
      _
    $region15: #{tpu_custom_call.1} parent=1 // pred_check_branch
      %34 = sbr.rel (0) target = $region17
    $region16: #{tpu_custom_call.1} parent=1 // pred_region
      %s36 = ssub.s32 256, 256
      %37 = vsyncadd [#allocation5], %s36
      %s39 = sshll.u32 [#allocation6], 4
      %s40 = int_to_ptr.vmem [resolvable:$true] %s39
      %42 = dma.vmem_to_hbm [thread:$0]  %s40, 256, %s2, [#allocation5]
    $region17: #{tpu_custom_call.1} parent=1 // pred_fallthru
      _
    // Predicated region
    $region18: #{tpu_custom_call.1} parent=1 // pred_check
      _
    $region19: #{tpu_custom_call.1} parent=1 // pred_check_branch
      %44 = sbr.rel (0) target = $region21
    $region20: #{tpu_custom_call.1} parent=1 // pred_region
      %45 = dma.done [#allocation5], 256
    $region21: #{tpu_custom_call.1} parent=1 // pred_fallthru
      _
    %46 = vsyncpa [#allocation4], 1
    %47 = vsyncpa [#allocation5], 1

</llo_original>
